<compile_context>
chip_gen: v6e
topology: v6e:2x2x1
jax: 0.10.0
libtpu: 0.0.40
codegen_flags: <defaults>
</compile_context>

<pallas_src>
import functools

import jax
import jax.numpy as jnp
from jax import lax
from jax.experimental import pallas as pl
from jax.experimental.pallas import tpu as pltpu

_LANE = 128


def _make_kernel(feat, tile_rows, needs_mask):
    def kernel(t_ref, x_ref, y_ref, inter_ref, denom_ref):
        k = pl.program_id(1)  # reduction axis (row-chunks of this sample)

        @pl.when(k == 0)
        def _init():
            inter_ref[...] = jnp.zeros_like(inter_ref)
            denom_ref[...] = jnp.zeros_like(denom_ref)

        t = t_ref[0]                      # f32 scalar from SMEM
        m1 = x_ref[...] >= t              # compare promotes to f32 in-register
        m2 = y_ref[...] >= t

        if needs_mask:
            # Mask wrapper zero-padding and the (unfetched) tail of a partial
            # trailing block. `feat`/`tile_rows` are static Python ints.
            rows = lax.broadcasted_iota(jnp.int32, (tile_rows, _LANE), 0)
            cols = lax.broadcasted_iota(jnp.int32, (tile_rows, _LANE), 1)
            flat = (k * tile_rows + rows) * _LANE + cols
            valid = flat < feat
            m1 = jnp.logical_and(m1, valid)
            m2 = jnp.logical_and(m2, valid)

        inter = jnp.logical_and(m1, m2).astype(jnp.float32)
        both = m1.astype(jnp.float32) + m2.astype(jnp.float32)

        # Lane/sublane-preserving accumulation: reduce only across vregs
        # (elementwise VPU adds); defer the cross-lane reduce to the wrapper.
        inter_ref[...] += jnp.sum(inter.reshape(tile_rows // 8, 8, _LANE), axis=0)
        denom_ref[...] += jnp.sum(both.reshape(tile_rows // 8, 8, _LANE), axis=0)

    return kernel


def _choose_tile_rows(total_rows, max_itemsize, requested=None,
                      target_block_bytes=2 * 1024 * 1024):
    """Rows per grid step: multiple of 8, >=8, <= total_rows, ~2 MiB/block."""
    if requested is not None:
        rows = int(requested)
    else:
        rows = target_block_bytes // (_LANE * max_itemsize)
    rows = max(8, (rows // 8) * 8)
    rows = min(rows, total_rows)          # total_rows is already a multiple of 8
    return int(rows)


def soft_dice_loss(logits, targets, t, *, tile_rows=None):
    """Pallas implementation of SoftDiceLoss.forward(logits, targets, t)."""
    num = logits.shape[0]
    assert targets.shape[0] == num

    x = logits.reshape(num, -1)
    y = targets.reshape(num, -1)
    if not jnp.issubdtype(x.dtype, jnp.floating):
        x = x.astype(jnp.float32)
    if not jnp.issubdtype(y.dtype, jnp.floating):
        y = y.astype(jnp.float32)
    feat = x.shape[1]
    assert y.shape[1] == feat

    # Pad feature dim to a multiple of 1024 (=> rows multiple of 8). Padded
    # elements are masked inside the kernel, so the pad value is irrelevant.
    padded_feat = ((feat + 1023) // 1024) * 1024
    if padded_feat != feat:
        pad = padded_feat - feat
        x = jnp.pad(x, ((0, 0), (0, pad)))
        y = jnp.pad(y, ((0, 0), (0, pad)))
    total_rows = padded_feat // _LANE

    max_itemsize = max(x.dtype.itemsize, y.dtype.itemsize)
    tr = _choose_tile_rows(total_rows, max_itemsize, requested=tile_rows)
    k_tiles = pl.cdiv(total_rows, tr)
    needs_mask = (padded_feat != feat) or (total_rows % tr != 0)

    x3 = x.reshape(num, total_rows, _LANE)
    y3 = y.reshape(num, total_rows, _LANE)
    t_arr = jnp.asarray([t], dtype=jnp.float32)

    bytes_accessed = (num * feat * (x.dtype.itemsize + y.dtype.itemsize)
                      + 2 * num * 8 * _LANE * 4)
    cost = pl.CostEstimate(flops=5 * num * feat, transcendentals=0,
                           bytes_accessed=bytes_accessed)

    inter_acc, denom_acc = pl.pallas_call(
        _make_kernel(feat, tr, needs_mask),
        out_shape=(jax.ShapeDtypeStruct((num, 8, _LANE), jnp.float32),
                   jax.ShapeDtypeStruct((num, 8, _LANE), jnp.float32)),
        grid_spec=pltpu.PrefetchScalarGridSpec(
            num_scalar_prefetch=0,
            grid=(num, k_tiles),
            in_specs=[
                pl.BlockSpec(memory_space=pltpu.SMEM),                  # t
                pl.BlockSpec((None, tr, _LANE), lambda i, k: (i, k, 0)),  # logits
                pl.BlockSpec((None, tr, _LANE), lambda i, k: (i, k, 0)),  # targets
            ],
            out_specs=[
                pl.BlockSpec((None, 8, _LANE), lambda i, k: (i, 0, 0)),   # inter
                pl.BlockSpec((None, 8, _LANE), lambda i, k: (i, 0, 0)),   # m1+m2
            ],
        ),
        compiler_params=pltpu.CompilerParams(
            dimension_semantics=("parallel", "arbitrary"),
            vmem_limit_bytes=32 * 1024 * 1024,
        ),
        cost_estimate=cost,
    )(t_arr, x3, y3)

    # Trivial final reduction + score in plain JAX (tiny, avoids any
    # cross-core combine and keeps the kernel outputs lane-dense).
    smooth = jnp.float32(1e-4)
    inter_sum = inter_acc.sum(axis=(1, 2))
    denom_sum = denom_acc.sum(axis=(1, 2))
    score = (inter_sum + smooth) / (denom_sum + smooth)
    return jnp.float32(1.0) - jnp.float32(2.0) * score.sum() / num


def _reference(logits, targets, t):
    num = logits.shape[0]
    smooth = 0.0001
    m1 = (logits.reshape(num, -1).astype(jnp.float32) >= t).astype(jnp.float32)
    m2 = (targets.reshape(num, -1).astype(jnp.float32) >= t).astype(jnp.float32)
    inter = m1 * m2
    score = (inter.sum(1) + smooth) / (m1.sum(1) + m2.sum(1) + smooth)
    return 1.0 - 2.0 * score.sum() / num


if __name__ == "__main__":
    checks = []

    # 1) standard NCHW f32, exact tiling (F = 1024).
    k1, k2 = jax.random.split(jax.random.PRNGKey(0))
    logits = jax.random.uniform(k1, (2, 4, 16, 16), dtype=jnp.float32)
    targets = (jax.random.uniform(k2, (2, 4, 16, 16)) > 0.5).astype(jnp.float32)
    checks.append((logits, targets, 0.5, None))

    # 2) awkward feature count (F = 231): wrapper pad + in-kernel mask path.
    k3, k4 = jax.random.split(jax.random.PRNGKey(1))
    la = jax.random.uniform(k3, (2, 3, 7, 11), dtype=jnp.float32)
    ta = jax.random.uniform(k4, (2, 3, 7, 11), dtype=jnp.float32)
    checks.append((la, ta, 0.3, None))

    # 3) multi-step reduction with a partial trailing block (rows=64, tile=24).
    k5, k6 = jax.random.split(jax.random.PRNGKey(2))
    lb = jax.random.uniform(k5, (3, 8, 32, 32), dtype=jnp.float32)
    tb = (jax.random.uniform(k6, (3, 8, 32, 32)) > 0.5).astype(jnp.float32)
    checks.append((lb, tb, 0.5, 24))

    # 4) bf16 logits streamed in native dtype (threshold compare still in f32).
    checks.append((logits.astype(jnp.bfloat16), targets, 0.5, None))

    for lg, tg, thr, tr in checks:
        out = jax.block_until_ready(soft_dice_loss(lg, tg, thr, tile_rows=tr))
        ref = _reference(lg, tg, thr)
        assert jnp.allclose(out, ref, atol=1e-5, rtol=1e-5), (lg.shape, out, ref)

    print("KERNEL_OK")
</pallas_src>

<mosaic_0001>
module attributes {stable_mosaic.version = 11 : i64} {
  func.func @kernel(%arg0: i32, %arg1: i32, %arg2: memref<1xf32, #tpu.memory_space<smem>>, %arg3: memref<1x8x128xf32, #tpu.memory_space<vmem>>, %arg4: memref<1x8x128xf32, #tpu.memory_space<vmem>>, %arg5: memref<1x8x128xf32, #tpu.memory_space<vmem>>, %arg6: memref<1x8x128xf32, #tpu.memory_space<vmem>>) attributes {dimension_semantics = [#tpu.dimension_semantics<parallel>, #tpu.dimension_semantics<arbitrary>], iteration_bounds = array<i64: 2, 1>, scalar_prefetch = 0 : i64, scratch_operands = 0 : i64, tpu.core_type = #tpu.core_type<tc>, window_params = [{transform_indices = @transform_0, window_bounds = array<i64: 1>}, {transform_indices = @transform_1, window_bounds = array<i64: 1, 8, 128>}, {transform_indices = @transform_2, window_bounds = array<i64: 1, 8, 128>}, {transform_indices = @transform_3, window_bounds = array<i64: 1, 8, 128>}, {transform_indices = @transform_4, window_bounds = array<i64: 1, 8, 128>}]} {
    %c0_i32 = arith.constant 0 : i32
    %0 = arith.cmpi eq, %arg1, %c0_i32 : i32
    %1 = arith.extui %0 : i1 to i32
    %c0_i32_0 = arith.constant 0 : i32
    %2 = arith.cmpi ne, %1, %c0_i32_0 : i32
    scf.if %2 {
      %cst_20 = arith.constant 0.000000e+00 : f32
      %36 = vector.broadcast %cst_20 : f32 to vector<8x128xf32>
      %c0_21 = arith.constant 0 : index
      %c0_22 = arith.constant 0 : index
      %c0_23 = arith.constant 0 : index
      %37 = vector.load %arg5[%c0_21, %c0_22, %c0_23] : memref<1x8x128xf32, #tpu.memory_space<vmem>>, vector<1x8x128xf32>
      %38 = vector.shape_cast %37 : vector<1x8x128xf32> to vector<8x128xf32>
      %39 = vector.shape_cast %36 : vector<8x128xf32> to vector<1x8x128xf32>
      tpu.vector_store %arg5[%c0_21, %c0_22, %c0_23], %39 {strides = array<i32>} : memref<1x8x128xf32, #tpu.memory_space<vmem>>, vector<1x8x128xf32>,
      %cst_24 = arith.constant 0.000000e+00 : f32
      %40 = vector.broadcast %cst_24 : f32 to vector<8x128xf32>
      %c0_25 = arith.constant 0 : index
      %c0_26 = arith.constant 0 : index
      %c0_27 = arith.constant 0 : index
      %41 = vector.load %arg6[%c0_25, %c0_26, %c0_27] : memref<1x8x128xf32, #tpu.memory_space<vmem>>, vector<1x8x128xf32>
      %42 = vector.shape_cast %41 : vector<1x8x128xf32> to vector<8x128xf32>
      %43 = vector.shape_cast %40 : vector<8x128xf32> to vector<1x8x128xf32>
      tpu.vector_store %arg6[%c0_25, %c0_26, %c0_27], %43 {strides = array<i32>} : memref<1x8x128xf32, #tpu.memory_space<vmem>>, vector<1x8x128xf32>,
    } else {
    }
    %c0 = arith.constant 0 : index
    %3 = memref.load %arg2[%c0] : memref<1xf32, #tpu.memory_space<smem>>
    %c0_1 = arith.constant 0 : index
    %c0_2 = arith.constant 0 : index
    %c0_3 = arith.constant 0 : index
    %4 = vector.load %arg3[%c0_1, %c0_2, %c0_3] : memref<1x8x128xf32, #tpu.memory_space<vmem>>, vector<1x8x128xf32>
    %5 = vector.shape_cast %4 : vector<1x8x128xf32> to vector<8x128xf32>
    %6 = vector.broadcast %3 : f32 to vector<8x128xf32>
    %7 = arith.cmpf oge, %5, %6 : vector<8x128xf32>
    %c0_4 = arith.constant 0 : index
    %c0_5 = arith.constant 0 : index
    %c0_6 = arith.constant 0 : index
    %8 = vector.load %arg4[%c0_4, %c0_5, %c0_6] : memref<1x8x128xf32, #tpu.memory_space<vmem>>, vector<1x8x128xf32>
    %9 = vector.shape_cast %8 : vector<1x8x128xf32> to vector<8x128xf32>
    %10 = vector.broadcast %3 : f32 to vector<8x128xf32>
    %11 = arith.cmpf oge, %9, %10 : vector<8x128xf32>
    %12 = arith.andi %7, %11 : vector<8x128xi1>
    %13 = arith.extui %12 : vector<8x128xi1> to vector<8x128xi32>
    %14 = arith.sitofp %13 : vector<8x128xi32> to vector<8x128xf32>
    %15 = arith.extui %7 : vector<8x128xi1> to vector<8x128xi32>
    %16 = arith.sitofp %15 : vector<8x128xi32> to vector<8x128xf32>
    %17 = arith.extui %11 : vector<8x128xi1> to vector<8x128xi32>
    %18 = arith.sitofp %17 : vector<8x128xi32> to vector<8x128xf32>
    %19 = arith.addf %16, %18 : vector<8x128xf32>
    %c0_7 = arith.constant 0 : index
    %c0_8 = arith.constant 0 : index
    %c0_9 = arith.constant 0 : index
    %20 = vector.load %arg5[%c0_7, %c0_8, %c0_9] : memref<1x8x128xf32, #tpu.memory_space<vmem>>, vector<1x8x128xf32>
    %21 = vector.shape_cast %20 : vector<1x8x128xf32> to vector<8x128xf32>
    %22 = vector.shape_cast %14 : vector<8x128xf32> to vector<1x8x128xf32>
    %cst = arith.constant dense<0.000000e+00> : vector<8x128xf32>
    %23 = vector.multi_reduction <add>, %22, %cst [0] : vector<1x8x128xf32> to vector<8x128xf32>
    %24 = arith.addf %21, %23 : vector<8x128xf32>
    %c0_10 = arith.constant 0 : index
    %c0_11 = arith.constant 0 : index
    %c0_12 = arith.constant 0 : index
    %25 = vector.load %arg5[%c0_10, %c0_11, %c0_12] : memref<1x8x128xf32, #tpu.memory_space<vmem>>, vector<1x8x128xf32>
    %26 = vector.shape_cast %25 : vector<1x8x128xf32> to vector<8x128xf32>
    %27 = vector.shape_cast %24 : vector<8x128xf32> to vector<1x8x128xf32>
    tpu.vector_store %arg5[%c0_10, %c0_11, %c0_12], %27 {strides = array<i32>} : memref<1x8x128xf32, #tpu.memory_space<vmem>>, vector<1x8x128xf32>,
    %c0_13 = arith.constant 0 : index
    %c0_14 = arith.constant 0 : index
    %c0_15 = arith.constant 0 : index
    %28 = vector.load %arg6[%c0_13, %c0_14, %c0_15] : memref<1x8x128xf32, #tpu.memory_space<vmem>>, vector<1x8x128xf32>
    %29 = vector.shape_cast %28 : vector<1x8x128xf32> to vector<8x128xf32>
    %30 = vector.shape_cast %19 : vector<8x128xf32> to vector<1x8x128xf32>
    %cst_16 = arith.constant dense<0.000000e+00> : vector<8x128xf32>
    %31 = vector.multi_reduction <add>, %30, %cst_16 [0] : vector<1x8x128xf32> to vector<8x128xf32>
    %32 = arith.addf %29, %31 : vector<8x128xf32>
    %c0_17 = arith.constant 0 : index
    %c0_18 = arith.constant 0 : index
    %c0_19 = arith.constant 0 : index
    %33 = vector.load %arg6[%c0_17, %c0_18, %c0_19] : memref<1x8x128xf32, #tpu.memory_space<vmem>>, vector<1x8x128xf32>
    %34 = vector.shape_cast %33 : vector<1x8x128xf32> to vector<8x128xf32>
    %35 = vector.shape_cast %32 : vector<8x128xf32> to vector<1x8x128xf32>
    tpu.vector_store %arg6[%c0_17, %c0_18, %c0_19], %35 {strides = array<i32>} : memref<1x8x128xf32, #tpu.memory_space<vmem>>, vector<1x8x128xf32>,
    return
  }
  func.func @transform_0(%arg0: i32, %arg1: i32) -> i32 {
    %c0_i32 = arith.constant 0 : i32
    %c0_i32_0 = arith.constant 0 : i32
    return %c0_i32 : i32
  }
  func.func @transform_1(%arg0: i32, %arg1: i32) -> (i32, i32, i32) {
    %c0_i32 = arith.constant 0 : i32
    %c0_i32_0 = arith.constant 0 : i32
    return %arg0, %arg1, %c0_i32 : i32, i32, i32
  }
  func.func @transform_2(%arg0: i32, %arg1: i32) -> (i32, i32, i32) {
    %c0_i32 = arith.constant 0 : i32
    %c0_i32_0 = arith.constant 0 : i32
    return %arg0, %arg1, %c0_i32 : i32, i32, i32
  }
  func.func @transform_3(%arg0: i32, %arg1: i32) -> (i32, i32, i32) {
    %c0_i32 = arith.constant 0 : i32
    %c0_i32_0 = arith.constant 0 : i32
    %c0_i32_1 = arith.constant 0 : i32
    return %arg0, %c0_i32, %c0_i32_0 : i32, i32, i32
  }
  func.func @transform_4(%arg0: i32, %arg1: i32) -> (i32, i32, i32) {
    %c0_i32 = arith.constant 0 : i32
    %c0_i32_0 = arith.constant 0 : i32
    %c0_i32_1 = arith.constant 0 : i32
    return %arg0, %c0_i32, %c0_i32_0 : i32, i32, i32
  }
}

</mosaic_0001>

<llo_original>
// kernel: tpu_custom_call.1
$region0: #{tpu_custom_call.1}
  #allocation0 [shape = 'u32[]', space=smem, size = 0x4, offset = 0x4, fixed_abs, tag = 'smem constant byte address 0x4 - core index']
  #allocation1 [shape = 'u32[144,128]{1,0:T(1,128)}', space=vmem, size = 0x12000, scoped, tag = 'internal scratch']
  #allocation2 [shape = 'f32[1]{0:T(128)S(6)}', space=smem, size = 0x200, scoped, tag = 'scoped memory for tpu_custom_call.1']
  %s0 = inlined_call_operand.<no memory space> [shape: f32[1], index: 0, kind: input, shape index: {}]
  %s1 = inlined_call_operand.hbm [shape: f32[2,8,128], index: 1, kind: input, shape index: {}]
  %s2 = inlined_call_operand.hbm [shape: f32[2,8,128], index: 2, kind: input, shape index: {}]
  %s3 = inlined_call_operand.hbm [shape: f32[2,8,128], index: 3, kind: output, shape index: {0}]
  %s4 = inlined_call_operand.hbm [shape: f32[2,8,128], index: 4, kind: output, shape index: {1}]
  %5 = xla_tuple %s3, %s4
  %s6 = sld [smem:[#allocation0]]
  $region65: #{tpu_custom_call.1} parent=0
    _
  %s8 = ssub.s32 1, %s6
  %s9 = scalar_select 0, %s8, %s6
  %10 = sst [smem:[#allocation2]] %s0
  $region1: #{tpu_custom_call.1} parent=0
    #allocation3 [shape = 'u8[8192]{0}', space=vmem, size = 0x2000, scoped, tag = 'input window, operand 1']
    #allocation4 [shape = 's32[2]{0}', space=sflag, size = 0x8, scoped, tag = 'scoped memory for tpu_custom_call.1']
    #allocation5 [shape = 's32[2]{0}', space=sflag, size = 0x8, scoped, tag = 'scoped memory for tpu_custom_call.1']
    #allocation6 [shape = 'u8[8192]{0}', space=vmem, size = 0x2000, scoped, tag = 'input window, operand 2']
    #allocation7 [shape = 's32[2]{0}', space=sflag, size = 0x8, scoped, tag = 'scoped memory for tpu_custom_call.1']
    #allocation8 [shape = 'u8[8192]{0}', space=vmem, size = 0x2000, scoped, tag = 'output window, operand 0']
    #allocation9 [shape = 'u8[8192]{0}', space=vmem, size = 0x2000, scoped, tag = 'output window, operand 1']
    #allocation10 [shape = 's32[2]{0}', space=sflag, size = 0x8, scoped, tag = 'scoped memory for tpu_custom_call.1']
    %11 = vsyncpa [#allocation4], 0
    %s12 = scalar_lea.sflag [#allocation4], 1
    %13 = vsyncpa %s12, 0
    %14 = vsyncpa [#allocation7], 0
    %s15 = scalar_lea.sflag [#allocation7], 1
    %16 = vsyncpa %s15, 0
    %17 = vsyncpa [#allocation5], 0
    %s18 = scalar_lea.sflag [#allocation5], 1
    %19 = vsyncpa %s18, 0
    %20 = vsyncpa [#allocation10], 0
    %s21 = scalar_lea.sflag [#allocation10], 1
    %22 = vsyncpa %s21, 0
    loop: start=0, step=1, limit=4
    $region2: #{tpu_custom_call.1} parent=1 // loop_pre_header
      _
    $region3: #{tpu_custom_call.1} parent=1 // loop_header
      %s24 = sphi 0, %s28
      %p25 = scmp.ge.s32.totalorder %s24, 4
      %s31 = sphi 0, %s43
      %s32 = sphi 0, %s39
      %s33 = sphi 0, %s31
      %s34 = sphi 0, %s32
      %s35 = sphi 0, %s33
      %s36 = sphi 0, %s34
      %s44 = sphi 0, %s44
      %s46 = sphi 0, %s44
      %s47 = sphi 0, %s46
      %s61 = sphi 0, %s47
      %s69 = sphi 0, %s71
      %s72 = sphi 0, %s69
      %s73 = sphi 0, %s72
      %s89 = sphi 0, %s73
      %s97 = sphi 0, %s99
      %s100 = sphi 0, %s97
      %s101 = sphi 0, %s100
      %s117 = sphi 0, %s101
      %s123 = sphi 0, %s125
      %s126 = sphi 0, %s123
      %s127 = sphi 0, %s126
      %s143 = sphi 0, %s127
      %s149 = sphi 0, %s151
      %s152 = sphi 0, %s149
      %s153 = sphi 0, %s152
      %s169 = sphi 0, %s153
    $region4: #{tpu_custom_call.1} parent=1 // loop_header_branch
      %27 = sbr.rel (%p25) target = $region8
    $region5: #{tpu_custom_call.1} parent=1 // loop_body
      %s29 = ssub.s32 %s24, 1
      %s30 = ssub.s32 %s24, 2
      %s37 = sadd.s32 1, %s32
      %p38 = scmp.ge.s32.totalorder %s37, 1
      %s39 = scalar_select %p38, 0, %s37
      %s40 = sadd.s32 1, %s31
      %s41 = scalar_select %p38, %s40, %s31
      %p42 = scmp.ge.s32.totalorder %s41, 2
      %s43 = scalar_select %p42, 0, %s41
      %s45 = sadd.s32 %s44, 1
      %p48 = scmp.eq.s32.totalorder %s24, 1
      %p49 = scmp.ne.s32.totalorder %s44, %s46
      %p50 = scmp.eq.s32.totalorder %s24, 0
      %p51 = por %p49, %p50
      %p52 = scmp.ne.s32.totalorder %s44, %s46
      %p53 = scmp.eq.s32.totalorder %s29, 1
      %p54 = por %p52, %p53
      %p55 = scmp.ne.s32.totalorder %s46, %s47
      %p56 = scmp.eq.s32.totalorder %s29, 0
      %p57 = por %p55, %p56
      %p58 = scmp.ne.s32.totalorder %s46, %s47
      %p59 = scmp.eq.s32.totalorder %s30, 1
      %p60 = por %p58, %p59
      %p62 = scmp.ne.s32.totalorder %s47, %s61
      %p63 = scmp.eq.s32.totalorder %s30, 0
      %p64 = por %p62, %p63
      %s65 = ssub.s32 %s31, %s43
      %s66 = ssub.s32 %s32, %s39
      %s67 = sor.u32 %s65, %s66
      %p68 = scmp.eq.s32.totalorder %s67, 0
      %s70 = sadd.s32 %s69, 1
      %s71 = scalar_select %p68, %s69, %s70
      %p74 = pneg %p68
      %p75 = scmp.eq.s32.totalorder %s24, 1
      %p76 = por %p74, %p75
      %p77 = scmp.ne.s32.totalorder %s69, %s72
      %p78 = scmp.eq.s32.totalorder %s24, 0
      %p79 = por %p77, %p78
      %p80 = scmp.ne.s32.totalorder %s69, %s72
      %p81 = scmp.eq.s32.totalorder %s29, 1
      %p82 = por %p80, %p81
      %p83 = scmp.ne.s32.totalorder %s72, %s73
      %p84 = scmp.eq.s32.totalorder %s29, 0
      %p85 = por %p83, %p84
      %p86 = scmp.ne.s32.totalorder %s72, %s73
      %p87 = scmp.eq.s32.totalorder %s30, 1
      %p88 = por %p86, %p87
      %p90 = scmp.ne.s32.totalorder %s73, %s89
      %p91 = scmp.eq.s32.totalorder %s30, 0
      %p92 = por %p90, %p91
      %s93 = ssub.s32 %s31, %s43
      %s94 = ssub.s32 %s32, %s39
      %s95 = sor.u32 %s93, %s94
      %p96 = scmp.eq.s32.totalorder %s95, 0
      %s98 = sadd.s32 %s97, 1
      %s99 = scalar_select %p96, %s97, %s98
      %p102 = pneg %p96
      %p103 = scmp.eq.s32.totalorder %s24, 1
      %p104 = por %p102, %p103
      %p105 = scmp.ne.s32.totalorder %s97, %s100
      %p106 = scmp.eq.s32.totalorder %s24, 0
      %p107 = por %p105, %p106
      %p108 = scmp.ne.s32.totalorder %s97, %s100
      %p109 = scmp.eq.s32.totalorder %s29, 1
      %p110 = por %p108, %p109
      %p111 = scmp.ne.s32.totalorder %s100, %s101
      %p112 = scmp.eq.s32.totalorder %s29, 0
      %p113 = por %p111, %p112
      %p114 = scmp.ne.s32.totalorder %s100, %s101
      %p115 = scmp.eq.s32.totalorder %s30, 1
      %p116 = por %p114, %p115
      %p118 = scmp.ne.s32.totalorder %s101, %s117
      %p119 = scmp.eq.s32.totalorder %s30, 0
      %p120 = por %p118, %p119
      %s121 = ssub.s32 %s31, %s43
      %p122 = scmp.eq.s32.totalorder %s121, 0
      %s124 = sadd.s32 %s123, 1
      %s125 = scalar_select %p122, %s123, %s124
      %p128 = pneg %p122
      %p129 = scmp.eq.s32.totalorder %s24, 1
      %p130 = por %p128, %p129
      %p131 = scmp.ne.s32.totalorder %s123, %s126
      %p132 = scmp.eq.s32.totalorder %s24, 0
      %p133 = por %p131, %p132
      %p134 = scmp.ne.s32.totalorder %s123, %s126
      %p135 = scmp.eq.s32.totalorder %s29, 1
      %p136 = por %p134, %p135
      %p137 = scmp.ne.s32.totalorder %s126, %s127
      %p138 = scmp.eq.s32.totalorder %s29, 0
      %p139 = por %p137, %p138
      %p140 = scmp.ne.s32.totalorder %s126, %s127
      %p141 = scmp.eq.s32.totalorder %s30, 1
      %p142 = por %p140, %p141
      %p144 = scmp.ne.s32.totalorder %s127, %s143
      %p145 = scmp.eq.s32.totalorder %s30, 0
      %p146 = por %p144, %p145
      %s147 = ssub.s32 %s31, %s43
      %p148 = scmp.eq.s32.totalorder %s147, 0
      %s150 = sadd.s32 %s149, 1
      %s151 = scalar_select %p148, %s149, %s150
      %p154 = pneg %p148
      %p155 = scmp.eq.s32.totalorder %s24, 1
      %p156 = por %p154, %p155
      %p157 = scmp.ne.s32.totalorder %s149, %s152
      %p158 = scmp.eq.s32.totalorder %s24, 0
      %p159 = por %p157, %p158
      %p160 = scmp.ne.s32.totalorder %s149, %s152
      %p161 = scmp.eq.s32.totalorder %s29, 1
      %p162 = por %p160, %p161
      %p163 = scmp.ne.s32.totalorder %s152, %s153
      %p164 = scmp.eq.s32.totalorder %s29, 0
      %p165 = por %p163, %p164
      %p166 = scmp.ne.s32.totalorder %s152, %s153
      %p167 = scmp.eq.s32.totalorder %s30, 1
      %p168 = por %p166, %p167
      %p170 = scmp.ne.s32.totalorder %s153, %s169
      %p171 = scmp.eq.s32.totalorder %s30, 0
      %p172 = por %p170, %p171
      %p173 = scmp.le.s32.totalorder 1, %s24
      %p174 = scmp.lt.s32.totalorder %s24, 3
      %p175 = pnand %p173, %p174
      %p176 = pneg %p175
      // Predicated region
      $region9: #{tpu_custom_call.1} parent=5 // pred_check
        _
      $region10: #{tpu_custom_call.1} parent=5 // pred_check_branch
        %178 = sbr.rel (%p175) target = $region12
      $region11: #{tpu_custom_call.1} parent=5 // pred_region
        %s179 = ssub.s32 %s24, 1
        // Predicated region
        $region13: #{tpu_custom_call.1} parent=11 // pred_check
          %p180 = pneg %p57
        $region14: #{tpu_custom_call.1} parent=11 // pred_check_branch
          %182 = sbr.rel (%p180) target = $region16
        $region15: #{tpu_custom_call.1} parent=11 // pred_region
          _
        $region16: #{tpu_custom_call.1} parent=11 // pred_fallthru
          _
      $region12: #{tpu_custom_call.1} parent=5 // pred_fallthru
        _
      %p183 = scmp.lt.s32.totalorder %s24, 2
      // Predicated region
      $region17: #{tpu_custom_call.1} parent=5 // pred_check
        %p184 = pneg %p183
      $region18: #{tpu_custom_call.1} parent=5 // pred_check_branch
        %186 = sbr.rel (%p184) target = $region20
      $region19: #{tpu_custom_call.1} parent=5 // pred_region
        // Predicated region
        $region21: #{tpu_custom_call.1} parent=19 // pred_check
          %p187 = pneg %p79
        $region22: #{tpu_custom_call.1} parent=19 // pred_check_branch
          %189 = sbr.rel (%p187) target = $region24
        $region23: #{tpu_custom_call.1} parent=19 // pred_region
          %s190 = sand.u32 %s69, 1
          %s191 = scalar_lea.sflag [#allocation4], %s190
          %s192 = sand.u32 %s69, 1
          %s193 = smul.addr %s192, 8
          %s194 = scalar_lea.vmem [#allocation3], %s193
          %s196 = ssub.s32 128, 128
          %197 = vsyncadd %s191, %s196
          %s198 = sadd.s32 %s32, %s31
          %s199 = smul.addr %s198, 128
          %s200 = scalar_lea.hbm %s1, %s199
          %s202 = sshll.u32 %s194, 4
          %s203 = int_to_ptr.vmem [resolvable:$true] %s202
          %205 = dma.hbm_to_vmem [thread:$0]  %s200, 128, %s203, %s191
        $region24: #{tpu_custom_call.1} parent=19 // pred_fallthru
          _
        // Predicated region
        $region25: #{tpu_custom_call.1} parent=19 // pred_check
          %p206 = pneg %p107
        $region26: #{tpu_custom_call.1} parent=19 // pred_check_branch
          %208 = sbr.rel (%p206) target = $region28
        $region27: #{tpu_custom_call.1} parent=19 // pred_region
          %s209 = sand.u32 %s97, 1
          %s210 = scalar_lea.sflag [#allocation7], %s209
          %s211 = sand.u32 %s97, 1
          %s212 = smul.addr %s211, 8
          %s213 = scalar_lea.vmem [#allocation6], %s212
          %s215 = ssub.s32 128, 128
          %216 = vsyncadd %s210, %s215
          %s217 = sadd.s32 %s32, %s31
          %s218 = smul.addr %s217, 128
          %s219 = scalar_lea.hbm %s2, %s218
          %s221 = sshll.u32 %s213, 4
          %s222 = int_to_ptr.vmem [resolvable:$true] %s221
          %224 = dma.hbm_to_vmem [thread:$0]  %s219, 128, %s222, %s210
        $region28: #{tpu_custom_call.1} parent=19 // pred_fallthru
          _
      $region20: #{tpu_custom_call.1} parent=5 // pred_fallthru
        _
      %p225 = scmp.le.s32.totalorder 1, %s24
      %p226 = scmp.lt.s32.totalorder %s24, 3
      %p227 = pnand %p225, %p226
      %p228 = pneg %p227
      // Predicated region
      $region29: #{tpu_custom_call.1} parent=5 // pred_check
        _
      $region30: #{tpu_custom_call.1} parent=5 // pred_check_branch
        %230 = sbr.rel (%p227) target = $region32
      $region31: #{tpu_custom_call.1} parent=5 // pred_region
        %s231 = ssub.s32 %s24, 1
        %s232 = sand.u32 %s72, 1
        %s233 = scalar_lea.sflag [#allocation4], %s232
        %s234 = sand.u32 %s72, 1
        %s235 = smul.addr %s234, 8
        %s236 = scalar_lea.vmem [#allocation3], %s235
        // Predicated region
        $region33: #{tpu_custom_call.1} parent=31 // pred_check
          %p237 = pneg %p85
        $region34: #{tpu_custom_call.1} parent=31 // pred_check_branch
          %239 = sbr.rel (%p237) target = $region36
        $region35: #{tpu_custom_call.1} parent=31 // pred_region
          %240 = dma.done %s233, 128
        $region36: #{tpu_custom_call.1} parent=31 // pred_fallthru
          _
        %s241 = sand.u32 %s100, 1
        %s242 = scalar_lea.sflag [#allocation7], %s241
        %s243 = sand.u32 %s100, 1
        %s244 = smul.addr %s243, 8
        %s245 = scalar_lea.vmem [#allocation6], %s244
        // Predicated region
        $region37: #{tpu_custom_call.1} parent=31 // pred_check
          %p246 = pneg %p113
        $region38: #{tpu_custom_call.1} parent=31 // pred_check_branch
          %248 = sbr.rel (%p246) target = $region40
        $region39: #{tpu_custom_call.1} parent=31 // pred_region
          %249 = dma.done %s242, 128
        $region40: #{tpu_custom_call.1} parent=31 // pred_fallthru
          _
        %p250 = pneg %p57
        %p251 = pneg %p54
        %s252 = sand.u32 %s72, 1
        %s253 = scalar_lea.sflag [#allocation4], %s252
        %s254 = sand.u32 %s72, 1
        %s255 = smul.addr %s254, 8
        %s256 = scalar_lea.vmem [#allocation3], %s255
        %p257 = pneg %p85
        %p258 = pneg %p82
        %s259 = sand.u32 %s100, 1
        %s260 = scalar_lea.sflag [#allocation7], %s259
        %s261 = sand.u32 %s100, 1
        %s262 = smul.addr %s261, 8
        %s263 = scalar_lea.vmem [#allocation6], %s262
        %p264 = pneg %p113
        %p265 = pneg %p110
        %p266 = pneg %p139
        %p267 = pneg %p136
        %s268 = sand.u32 %s126, 1
        %s269 = scalar_lea.sflag [#allocation5], %s268
        %s270 = sand.u32 %s126, 1
        %s271 = smul.addr %s270, 8
        %s272 = scalar_lea.vmem [#allocation8], %s271
        %p273 = pneg %p165
        %p274 = pneg %p162
        %s275 = sand.u32 %s152, 1
        %s276 = scalar_lea.sflag [#allocation10], %s275
        %s277 = sand.u32 %s152, 1
        %s278 = smul.addr %s277, 8
        %s279 = scalar_lea.vmem [#allocation9], %s278
        %p280 = scmp.eq.s32.totalorder %s34, 0
        // Predicated region
        $region41: #{tpu_custom_call.1} parent=31 // pred_check
          %p281 = pneg %p280
        $region42: #{tpu_custom_call.1} parent=31 // pred_check_branch
          %283 = sbr.rel (%p281) target = $region44
        $region43: #{tpu_custom_call.1} parent=31 // pred_region
          %284 = vst [vmem:[%s272] sm:$0xff] 0.0
          %285 = vst [vmem:[%s279] sm:$0xff] 0.0
        $region44: #{tpu_custom_call.1} parent=31 // pred_fallthru
          _
        %s286 = sld [smem:[#allocation2]]
        %v287 = vld [vmem:[%s236] sm:$0xff]
        %v288 = vstv %s286
        %vm289 = vcmp.ge.f32.partialorder %v287, %v288
        %v290 = vld [vmem:[%s245] sm:$0xff]
        %vm291 = vcmp.ge.f32.partialorder %v290, %v288
        %vm292 = vmand %vm289, %vm291
        %v293 = vsel %vm292, 1, 0
        %v294 = vcvt.s32.f32 %v293
        %v295 = vsel %vm289, 1, 0
        %v296 = vcvt.s32.f32 %v295
        %v297 = vsel %vm291, 1, 0
        %v298 = vcvt.s32.f32 %v297
        %v299 = vadd.f32 %v296, %v298
        %v300 = vld [vmem:[%s272] sm:$0xff]
        %v301 = vadd.f32 %v294, 0.0
        %v302 = vadd.f32 %v300, %v301
        %303 = vst [vmem:[%s272] sm:$0xff] %v302
        %v304 = vld [vmem:[%s279] sm:$0xff]
        %v305 = vadd.f32 %v299, 0.0
        %v306 = vadd.f32 %v304, %v305
        %307 = vst [vmem:[%s279] sm:$0xff] %v306
        %s308 = sand.u32 %s126, 1
        %s309 = scalar_lea.sflag [#allocation5], %s308
        %s310 = sand.u32 %s126, 1
        %s311 = smul.addr %s310, 8
        %s312 = scalar_lea.vmem [#allocation8], %s311
        %s313 = sand.u32 %s152, 1
        %s314 = scalar_lea.sflag [#allocation10], %s313
        %s315 = sand.u32 %s152, 1
        %s316 = smul.addr %s315, 8
        %s317 = scalar_lea.vmem [#allocation9], %s316
        // Predicated region
        $region45: #{tpu_custom_call.1} parent=31 // pred_check
          %p318 = pneg %p136
        $region46: #{tpu_custom_call.1} parent=31 // pred_check_branch
          %320 = sbr.rel (%p318) target = $region48
        $region47: #{tpu_custom_call.1} parent=31 // pred_region
          %s322 = ssub.s32 128, 128
          %323 = vsyncadd %s309, %s322
          %s324 = smul.addr %s33, 128
          %s325 = scalar_lea.hbm %s3, %s324
          %s327 = sshll.u32 %s312, 4
          %s328 = int_to_ptr.vmem [resolvable:$true] %s327
          %330 = dma.vmem_to_hbm [thread:$0]  %s328, 128, %s325, %s309
        $region48: #{tpu_custom_call.1} parent=31 // pred_fallthru
          _
        // Predicated region
        $region49: #{tpu_custom_call.1} parent=31 // pred_check
          %p331 = pneg %p162
        $region50: #{tpu_custom_call.1} parent=31 // pred_check_branch
          %333 = sbr.rel (%p331) target = $region52
        $region51: #{tpu_custom_call.1} parent=31 // pred_region
          %s335 = ssub.s32 128, 128
          %336 = vsyncadd %s314, %s335
          %s337 = smul.addr %s33, 128
          %s338 = scalar_lea.hbm %s4, %s337
          %s340 = sshll.u32 %s317, 4
          %s341 = int_to_ptr.vmem [resolvable:$true] %s340
          %343 = dma.vmem_to_hbm [thread:$0]  %s341, 128, %s338, %s314
        $region52: #{tpu_custom_call.1} parent=31 // pred_fallthru
          _
      $region32: #{tpu_custom_call.1} parent=5 // pred_fallthru
        _
      %p344 = scmp.le.s32.totalorder 2, %s24
      // Predicated region
      $region53: #{tpu_custom_call.1} parent=5 // pred_check
        %p345 = pneg %p344
      $region54: #{tpu_custom_call.1} parent=5 // pred_check_branch
        %347 = sbr.rel (%p345) target = $region56
      $region55: #{tpu_custom_call.1} parent=5 // pred_region
        %s348 = ssub.s32 %s24, 2
        // Predicated region
        $region57: #{tpu_custom_call.1} parent=55 // pred_check
          %p349 = pneg %p142
        $region58: #{tpu_custom_call.1} parent=55 // pred_check_branch
          %351 = sbr.rel (%p349) target = $region60
        $region59: #{tpu_custom_call.1} parent=55 // pred_region
          %s352 = sand.u32 %s127, 1
          %s353 = scalar_lea.sflag [#allocation5], %s352
          %s354 = sand.u32 %s127, 1
          %s355 = smul.addr %s354, 8
          %s356 = scalar_lea.vmem [#allocation8], %s355
          %357 = dma.done %s353, 128
        $region60: #{tpu_custom_call.1} parent=55 // pred_fallthru
          _
        // Predicated region
        $region61: #{tpu_custom_call.1} parent=55 // pred_check
          %p358 = pneg %p168
        $region62: #{tpu_custom_call.1} parent=55 // pred_check_branch
          %360 = sbr.rel (%p358) target = $region64
        $region63: #{tpu_custom_call.1} parent=55 // pred_region
          %s361 = sand.u32 %s153, 1
          %s362 = scalar_lea.sflag [#allocation10], %s361
          %s363 = sand.u32 %s153, 1
          %s364 = smul.addr %s363, 8
          %s365 = scalar_lea.vmem [#allocation9], %s364
          %366 = dma.done %s362, 128
        $region64: #{tpu_custom_call.1} parent=55 // pred_fallthru
          _
      $region56: #{tpu_custom_call.1} parent=5 // pred_fallthru
        _
    $region6: #{tpu_custom_call.1} parent=1 // loop_footer
      %s28 = sadd.s32 1, %s24
    $region7: #{tpu_custom_call.1} parent=1 // loop_footer_branch
      %23 = sbr.rel target = $region3
    $region8: #{tpu_custom_call.1} parent=1 // loop_exit
      _
    %367 = vsyncpa [#allocation4], 1
    %s368 = scalar_lea.sflag [#allocation4], 1
    %369 = vsyncpa %s368, 1
    %370 = vsyncpa [#allocation7], 1
    %s371 = scalar_lea.sflag [#allocation7], 1
    %372 = vsyncpa %s371, 1
    %373 = vsyncpa [#allocation5], 1
    %s374 = scalar_lea.sflag [#allocation5], 1
    %375 = vsyncpa %s374, 1
    %376 = vsyncpa [#allocation10], 1
    %s377 = scalar_lea.sflag [#allocation10], 1
    %378 = vsyncpa %s377, 1

</llo_original>
